<compile_context>
chip_gen: v5e
topology: v5e:2x2
jax: 0.10.0
libtpu: 0.0.40
codegen_flags: <defaults>
</compile_context>

<pallas_src>
import functools

import jax
import jax.numpy as jnp
from jax.experimental import pallas as pl
from jax.experimental.pallas import tpu as pltpu

_BN_EPS = 1e-5


# ----------------------------------------------------------------------------
# Pallas matmul kernel: o = A @ B + bias (+ ReLU), single K block
# ----------------------------------------------------------------------------
def _matmul_kernel(a_ref, b_ref, bias_ref, o_ref, *, relu):
    acc = jnp.dot(a_ref[...], b_ref[...], preferred_element_type=jnp.float32)
    acc = acc + bias_ref[...]
    if relu:
        acc = jnp.maximum(acc, 0.0)
    o_ref[...] = acc.astype(o_ref.dtype)


def _pad_axis(x, axis, mult):
    rem = (-x.shape[axis]) % mult
    if rem == 0:
        return x
    pad = [(0, 0)] * x.ndim
    pad[axis] = (0, rem)
    return jnp.pad(x, pad)


def _pick_tn(n):
    for tn in (512, 256, 128):
        if n >= tn and n % tn == 0:
            return tn
    return n  # full-N block (legal even if not 128-aligned)


def pallas_matmul(a, b, bias=None, relu=False):
    """A:(M,K) f32, B:(K,N) f32, bias:(N,) or None -> (M,N) f32.

    Operands cast to bf16 (f32 accumulation); M/K padded only to multiples of
    16; grid runs over N tiles only (no reduction grid axis, no scratch)."""
    M, K = a.shape
    K2, N = b.shape
    assert K == K2
    a_p = _pad_axis(_pad_axis(a.astype(jnp.bfloat16), 0, 16), 1, 16)
    b_p = _pad_axis(b.astype(jnp.bfloat16), 0, 16)
    Mp, Kp = a_p.shape
    if bias is None:
        bias_arr = jnp.zeros((1, N), jnp.float32)
    else:
        bias_arr = bias.reshape(1, N).astype(jnp.float32)

    tn = _pick_tn(N)
    grid = (N // tn,)
    out = pl.pallas_call(
        functools.partial(_matmul_kernel, relu=relu),
        out_shape=jax.ShapeDtypeStruct((Mp, N), jnp.float32),
        grid_spec=pltpu.PrefetchScalarGridSpec(
            num_scalar_prefetch=0,
            grid=grid,
            in_specs=[
                pl.BlockSpec((Mp, Kp), lambda j: (0, 0)),
                pl.BlockSpec((Kp, tn), lambda j: (0, j)),
                pl.BlockSpec((1, tn), lambda j: (0, j)),
            ],
            out_specs=pl.BlockSpec((Mp, tn), lambda j: (0, j)),
        ),
        compiler_params=pltpu.CompilerParams(
            dimension_semantics=("parallel",)),
    )(a_p, b_p, bias_arr)
    if Mp != M:
        out = out[:M]
    return out


# ----------------------------------------------------------------------------
# BatchNorm folding (eval mode, fresh running stats: mean=0, var=1)
# TODO(synk): trained running_mean/var would need to enter the fold here.
# ----------------------------------------------------------------------------
def _bn_scale(gamma):
    return gamma / jnp.sqrt(1.0 + _BN_EPS)


# ----------------------------------------------------------------------------
# Channel-last convolutions = im2col + Pallas matmul (BN + ReLU fused)
# ----------------------------------------------------------------------------
def conv1x3x3_bn(x, w, gamma, beta, relu):
    # x: (N,D,H,W,C) channel-last; w: (O,C,1,3,3), bias-free conv; BN folded.
    N, D, H, W, C = x.shape
    O = w.shape[0]
    s = _bn_scale(gamma)
    w_mat = (w[:, :, 0] * s[:, None, None, None]).transpose(2, 3, 1, 0)
    w_mat = w_mat.reshape(9 * C, O)                        # (kh,kw,c) x O
    xp = jnp.pad(x, ((0, 0), (0, 0), (1, 1), (1, 1), (0, 0)))
    cols = [xp[:, :, kh:kh + H, kw:kw + W, :]
            for kh in range(3) for kw in range(3)]
    patches = jnp.stack(cols, axis=4)                      # (N,D,H,W,9,C)
    out = pallas_matmul(patches.reshape(N * D * H * W, 9 * C), w_mat,
                        bias=beta, relu=relu)
    return out.reshape(N, D, H, W, O)


def conv3x3x3_bn(x, w, gamma, beta, relu):
    # x: (N,D,H,W,C); w: (O,C,3,3,3), bias-free conv; BN folded.
    N, D, H, W, C = x.shape
    O = w.shape[0]
    s = _bn_scale(gamma)
    w_mat = (w * s[:, None, None, None, None]).transpose(2, 3, 4, 1, 0)
    w_mat = w_mat.reshape(27 * C, O)                       # (kd,kh,kw,c) x O
    xp = jnp.pad(x, ((0, 0), (1, 1), (1, 1), (1, 1), (0, 0)))
    cols = [xp[:, kd:kd + D, kh:kh + H, kw:kw + W, :]
            for kd in range(3) for kh in range(3) for kw in range(3)]
    patches = jnp.stack(cols, axis=4)                      # (N,D,H,W,27,C)
    out = pallas_matmul(patches.reshape(N * D * H * W, 27 * C), w_mat,
                        bias=beta, relu=relu)
    return out.reshape(N, D, H, W, O)


def freq_conv1_fused(x, freq_params):
    # Fuse the 5 branch conv1 layers (kd=5i, front-pad 5i-1) into ONE matmul
    # with K = 25*C and N = 5*64; branch weights are right-aligned along kd.
    N, D, H, W, C = x.shape
    KD = max(fp['conv1_w'].shape[2] for fp in freq_params)  # = 25
    O = freq_params[0]['conv1_w'].shape[0]                  # = 64
    n_br = len(freq_params)
    w_fused = jnp.zeros((KD, C, n_br * O), jnp.float32)
    b_fused = []
    for idx, fp in enumerate(freq_params):
        kd = fp['conv1_w'].shape[2]
        s = _bn_scale(fp['bn1_g'])
        w_b = (fp['conv1_w'][:, :, :, 0, 0] * s[:, None, None])  # (O,C,kd)
        w_b = w_b.transpose(2, 1, 0)                              # (kd,C,O)
        w_fused = w_fused.at[KD - kd:, :, idx * O:(idx + 1) * O].set(w_b)
        b_fused.append(fp['conv1_b'] * s + fp['bn1_b'])
    b_fused = jnp.concatenate(b_fused)

    xp = jnp.pad(x, ((0, 0), (KD - 1, 0), (0, 0), (0, 0), (0, 0)))
    cols = [xp[:, k:k + D] for k in range(KD)]
    patches = jnp.stack(cols, axis=4)                       # (N,D,H,W,KD,C)
    out = pallas_matmul(patches.reshape(N * D * H * W, KD * C),
                        w_fused.reshape(KD * C, n_br * O),
                        bias=b_fused, relu=True)
    return out.reshape(N, D, H, W, n_br * O)


def freq_conv2(y, w, conv_b, gamma, beta):
    # y: (N,25,H,W,64); Conv3d(64->featDim, (25,1,1)) + BN + ReLU; Dout = 1.
    N, D, H, W, C = y.shape
    O = w.shape[0]
    s = _bn_scale(gamma)
    w_mat = (w[:, :, :, 0, 0] * s[:, None, None]).transpose(2, 1, 0)  # (D,C,O)
    w_mat = w_mat.reshape(D * C, O)
    bias = conv_b * s + beta
    A = y.transpose(0, 2, 3, 1, 4).reshape(N * H * W, D * C)   # (d,c) ordering
    out = pallas_matmul(A, w_mat, bias=bias, relu=True)
    return out.reshape(N, H, W, O)


# ----------------------------------------------------------------------------
# Module pieces
# ----------------------------------------------------------------------------
def residual_block(x, p):
    out = conv1x3x3_bn(x, p['conv1_w'], p['bn1_g'], p['bn1_b'], relu=True)
    out = conv1x3x3_bn(out, p['conv2_w'], p['bn2_g'], p['bn2_b'], relu=False)
    if 'down_w' in p:
        residual = conv3x3x3_bn(x, p['down_w'], p['down_bn_g'], p['down_bn_b'],
                                relu=False)
    else:
        residual = x
    return jax.nn.relu(out + residual)


def encoder_forward(x_cl, params):
    # x_cl: (bt, D=25, H=3, W=2, C) channel-last
    h = x_cl
    for blk in params['res_blocks']:
        h = residual_block(h, blk)
    spatial = jnp.mean(h, axis=1)                       # AvgPool3d((25,1,1)) -> (bt,3,2,32)

    y = freq_conv1_fused(x_cl, params['freq'])          # (bt,25,3,2,5*64)
    O1 = params['freq'][0]['conv1_w'].shape[0]
    feats = [spatial]
    for idx, fp in enumerate(params['freq']):
        yb = y[..., idx * O1:(idx + 1) * O1]
        feats.append(freq_conv2(yb, fp['conv2_w'], fp['conv2_b'],
                                fp['bn2_g'], fp['bn2_b']))
    return jnp.concatenate(feats, axis=-1)              # (bt,3,2,192) channel-last


def disentangler(x, p):
    # x: (bt, 6, K); Linear(K, O, bias=False) + BatchNorm1d(6) + ReLU.
    # BatchNorm1d(6) normalizes per hw position (dim 1) -> cannot fold into the
    # weight columns; keep as a tiny elementwise epilogue.
    # TODO(synk): Dropout(0.5) in DisentanglerId/Action is eval-mode identity.
    bt, hw, k = x.shape
    y = pallas_matmul(x.reshape(bt * hw, k), p['w'].T)
    y = y.reshape(bt, hw, -1)
    s = _bn_scale(p['bn_g'])
    y = y * s[None, :, None] + p['bn_b'][None, :, None]
    return jax.nn.relu(y)


def channel_attention(x, b, t, p):
    # x: (bt, 6, 2048) with bt ordered (t, b)
    bt, hw, f = x.shape
    md = p['conv_w'].shape[0]
    assert p['tconv_w'].shape[-1] == t, "attention_tconv kernel [1,5] needs t==5"
    # 1x1 Conv2d(2048 -> 1024) + bias + ReLU == per-position matmul (Pallas)
    a = pallas_matmul(x.reshape(bt * hw, f), p['conv_w'].reshape(md, f).T,
                      bias=p['conv_b'], relu=True)          # (bt*6, 1024)
    a = a.reshape(t, b, hw, md)
    # Conv2d(1024 -> 1, [1,5]) over t + ReLU: degenerate N=1 GEMM -> plain jnp.
    w_t = p['tconv_w'].reshape(md, t)
    logits = jnp.einsum('tbhc,ct->bh', a, w_t) + p['tconv_b'][0]
    att = jax.nn.softmax(jax.nn.relu(logits), axis=1)        # (b, 6)
    # value path: average over t, attention-weighted sum over hw
    x_avg = jnp.mean(x.reshape(t, b, hw, f), axis=0)         # (b, 6, f)
    return jnp.sum(x_avg * att[:, :, None], axis=1)          # (b, f)


def classifier(x, w1, w2):
    # M = batch (2): degenerate for the MXU -> plain jnp per perf review.
    h = jax.nn.relu(x @ w1.T)
    return h @ w2.T


def domain2vector_forward(x1, params):
    b, t, c, f, h, w = x1.shape
    # (b,t,c,f,h,w) -> (t*b, c, f, h, w) -> channel-last (t*b, f, h, w, c)
    x = x1.transpose(1, 0, 2, 3, 4, 5).reshape(t * b, c, f, h, w)
    x_cl = x.transpose(0, 2, 3, 4, 1)
    enc = encoder_forward(x_cl, params['encoder'])           # (bt,3,2,192) channel-last
    bt = t * b
    # channel-last (bt,3,2,C) flattened over (h,w) == NCHW reshape + permute
    x11 = enc.reshape(bt, h * w, -1)                         # (bt, 6, 192)
    mid = disentangler(x11, params['dis_common'])            # (bt, 6, 3072)
    id_feat = disentangler(mid, params['dis_id'])            # (bt, 6, 2048)
    act_feat = disentangler(mid, params['dis_act'])          # (bt, 6, 2048)
    idc = channel_attention(id_feat, b, t, params['id_att'])     # (b, 2048)
    actc = channel_attention(act_feat, b, t, params['act_att'])  # (b, 2048)
    id_dom = classifier(idc, params['id_cls_w1'], params['id_cls_w2'])    # (b, 50)
    act_dom = classifier(actc, params['act_cls_w1'], params['act_cls_w2'])  # (b, 4)
    return idc, id_dom, act_dom


# ----------------------------------------------------------------------------
# Deterministic parameter construction (xavier-normal, as in weights_init)
# ----------------------------------------------------------------------------
def build_params(key, csi_channel, feat_dim=32):
    keys = iter(jax.random.split(key, 256))

    def nk():
        return next(keys)

    def xavier(shape, fan_in, fan_out):
        std = (2.0 / (fan_in + fan_out)) ** 0.5
        return std * jax.random.normal(nk(), shape, dtype=jnp.float32)

    def conv3d_w(o, c, kd, kh, kw):
        rf = kd * kh * kw
        return xavier((o, c, kd, kh, kw), c * rf, o * rf)

    def lin_w(o, i):
        return xavier((o, i), i, o)

    ones = lambda n: jnp.ones((n,), jnp.float32)
    zeros = lambda n: jnp.zeros((n,), jnp.float32)

    res_blocks = []
    in_ch = csi_channel
    for bi in range(4):
        blk = dict(
            conv1_w=conv3d_w(feat_dim, in_ch, 1, 3, 3),
            bn1_g=ones(feat_dim), bn1_b=zeros(feat_dim),
            conv2_w=conv3d_w(feat_dim, feat_dim, 1, 3, 3),
            bn2_g=ones(feat_dim), bn2_b=zeros(feat_dim),
        )
        if bi == 0 and in_ch != feat_dim:
            blk['down_w'] = conv3d_w(feat_dim, in_ch, 3, 3, 3)
            blk['down_bn_g'] = ones(feat_dim)
            blk['down_bn_b'] = zeros(feat_dim)
        res_blocks.append(blk)
        in_ch = feat_dim

    freq = []
    for i in range(1, 6):
        freq.append(dict(
            conv1_w=conv3d_w(64, csi_channel, 5 * i, 1, 1), conv1_b=zeros(64),
            bn1_g=ones(64), bn1_b=zeros(64),
            conv2_w=conv3d_w(feat_dim, 64, 25, 1, 1), conv2_b=zeros(feat_dim),
            bn2_g=ones(feat_dim), bn2_b=zeros(feat_dim),
        ))

    def att_params():
        return dict(
            conv_w=conv3d_w(1024, 2048, 1, 1, 1)[:, :, 0],   # (1024, 2048, 1, 1)
            conv_b=zeros(1024),
            tconv_w=conv3d_w(1, 1024, 1, 1, 5)[:, :, 0],     # (1, 1024, 1, 5)
            tconv_b=zeros(1),
        )

    return dict(
        encoder=dict(res_blocks=res_blocks, freq=freq),
        dis_common=dict(w=lin_w(3072, feat_dim * 6), bn_g=ones(6), bn_b=zeros(6)),
        dis_id=dict(w=lin_w(2048, 3072), bn_g=ones(6), bn_b=zeros(6)),
        dis_act=dict(w=lin_w(2048, 3072), bn_g=ones(6), bn_b=zeros(6)),
        id_att=att_params(),
        act_att=att_params(),
        id_cls_w1=lin_w(256, 2048), id_cls_w2=lin_w(50, 256),
        act_cls_w1=lin_w(256, 2048), act_cls_w2=lin_w(4, 256),
    )


if __name__ == "__main__":
    # Shapes forced by the module: featDim=32 (Linear 32*6), f=25 (kernel 25),
    # h*w=6 (BatchNorm1d(6) / reshape (3,2)), t=5 (attention_tconv [1,5]).
    b, t, c, f, h, w = 2, 5, 4, 25, 3, 2
    root = jax.random.PRNGKey(0)
    k_params, k_input, k_chk = jax.random.split(root, 3)
    params = build_params(k_params, csi_channel=c, feat_dim=32)
    x1 = jax.random.normal(k_input, (b, t, c, f, h, w), dtype=jnp.float32)

    # Cheap numerical smoke-check of the Pallas matmul vs a bf16-matched XLA ref.
    ka, kb = jax.random.split(k_chk)
    A = jax.random.normal(ka, (60, 192), jnp.float32)
    B = jax.random.normal(kb, (192, 320), jnp.float32)
    bias = 0.01 * jnp.arange(320, dtype=jnp.float32)
    got = pallas_matmul(A, B, bias=bias, relu=True)
    want = jax.nn.relu(
        jnp.dot(A.astype(jnp.bfloat16), B.astype(jnp.bfloat16),
                preferred_element_type=jnp.float32) + bias)
    assert jnp.allclose(got, want, rtol=2e-2, atol=2e-2), "pallas matmul mismatch"

    fwd = jax.jit(domain2vector_forward)
    idc, id_dom, act_dom = fwd(x1, params)
    jax.block_until_ready((idc, id_dom, act_dom))
    assert idc.shape == (b, 2048)
    assert id_dom.shape == (b, 50)
    assert act_dom.shape == (b, 4)
    print("KERNEL_OK")
</pallas_src>

<mosaic_0001>
module attributes {stable_mosaic.version = 11 : i64} {
  func.func @_matmul_kernel(%arg0: i32, %arg1: memref<64x192xbf16, #tpu.memory_space<vmem>>, %arg2: memref<192x320xbf16, #tpu.memory_space<vmem>>, %arg3: memref<1x320xf32, #tpu.memory_space<vmem>>, %arg4: memref<64x320xf32, #tpu.memory_space<vmem>>) attributes {dimension_semantics = [#tpu.dimension_semantics<parallel>], iteration_bounds = array<i64: 1>, scalar_prefetch = 0 : i64, scratch_operands = 0 : i64, tpu.core_type = #tpu.core_type<tc>, window_params = [{pipeline_mode = #tpu.pipeline_mode<synchronous>, transform_indices = @transform_0, window_bounds = array<i64: 64, 192>}, {transform_indices = @transform_1, window_bounds = array<i64: 192, 320>}, {transform_indices = @transform_2, window_bounds = array<i64: 1, 320>}, {transform_indices = @transform_3, window_bounds = array<i64: 64, 320>}]} {
    %c0 = arith.constant 0 : index
    %c0_0 = arith.constant 0 : index
    %0 = vector.load %arg1[%c0, %c0_0] : memref<64x192xbf16, #tpu.memory_space<vmem>>, vector<64x192xbf16>
    %c0_1 = arith.constant 0 : index
    %c0_2 = arith.constant 0 : index
    %1 = vector.load %arg2[%c0_1, %c0_2] : memref<192x320xbf16, #tpu.memory_space<vmem>>, vector<192x320xbf16>
    %cst = arith.constant dense<0.000000e+00> : vector<64x320xf32>
    %2 = tpu.matmul %0, %1, %cst {dimension_numbers = #tpu.dot_dimension_numbers<[1], [0], [0], [1], [0, 0, 1, 1], [], []>} : vector<64x192xbf16>, vector<192x320xbf16>, vector<64x320xf32> -> vector<64x320xf32>
    %c0_3 = arith.constant 0 : index
    %c0_4 = arith.constant 0 : index
    %3 = vector.load %arg3[%c0_3, %c0_4] : memref<1x320xf32, #tpu.memory_space<vmem>>, vector<1x320xf32>
    %4 = vector.broadcast %3 : vector<1x320xf32> to vector<64x320xf32>
    %5 = arith.addf %2, %4 : vector<64x320xf32>
    %cst_5 = arith.constant 0.000000e+00 : f32
    %6 = vector.broadcast %cst_5 : f32 to vector<64x320xf32>
    %7 = arith.maximumf %5, %6 : vector<64x320xf32>
    %c0_6 = arith.constant 0 : index
    %c0_7 = arith.constant 0 : index
    %8 = vector.load %arg4[%c0_6, %c0_7] : memref<64x320xf32, #tpu.memory_space<vmem>>, vector<64x320xf32>
    tpu.vector_store %arg4[%c0_6, %c0_7], %7 {strides = array<i32>} : memref<64x320xf32, #tpu.memory_space<vmem>>, vector<64x320xf32>,
    return
  }
  func.func @transform_0(%arg0: i32) -> (i32, i32) {
    %c0_i32 = arith.constant 0 : i32
    %c0_i32_0 = arith.constant 0 : i32
    %c0_i32_1 = arith.constant 0 : i32
    return %c0_i32, %c0_i32_0 : i32, i32
  }
  func.func @transform_1(%arg0: i32) -> (i32, i32) {
    %c0_i32 = arith.constant 0 : i32
    %c0_i32_0 = arith.constant 0 : i32
    return %c0_i32, %arg0 : i32, i32
  }
  func.func @transform_2(%arg0: i32) -> (i32, i32) {
    %c0_i32 = arith.constant 0 : i32
    %c0_i32_0 = arith.constant 0 : i32
    return %c0_i32, %arg0 : i32, i32
  }
  func.func @transform_3(%arg0: i32) -> (i32, i32) {
    %c0_i32 = arith.constant 0 : i32
    %c0_i32_0 = arith.constant 0 : i32
    return %c0_i32, %arg0 : i32, i32
  }
}

</mosaic_0001>

<llo_original>
// kernel: tpu_custom_call.1
$region0: #{tpu_custom_call.1}
  #allocation0 [shape = 'u32[]', space=smem, size = 0x4, offset = 0x4, fixed_abs, tag = 'smem constant byte address 0x4 - core index']
  #allocation1 [shape = 'u32[72,128]{1,0:T(1,128)}', space=vmem, size = 0x9000, scoped, tag = 'internal scratch']
  %s0 = inlined_call_operand.hbm [shape: bf16[64,192], index: 0, kind: input, shape index: {}]
  %s1 = inlined_call_operand.hbm [shape: bf16[192,320], index: 1, kind: input, shape index: {}]
  %s2 = inlined_call_operand.hbm [shape: f32[1,320], index: 2, kind: input, shape index: {}]
  %s3 = inlined_call_operand.hbm [shape: f32[64,320], index: 3, kind: output, shape index: {}]
  %s4 = sld [smem:[#allocation0]]
  $region34: #{tpu_custom_call.1} parent=0
    _
  %s6 = ssub.s32 1, %s4
  %s7 = scalar_select 0, %s6, %s4
  $region1: #{tpu_custom_call.1} parent=0
    #allocation2 [shape = 'u8[32768]{0}', space=vmem, size = 0x8000, scoped, tag = 'input window, operand 0, single buffered']
    #allocation3 [shape = 's32[1]{0}', space=sflag, size = 0x4, scoped, tag = 'scoped memory for tpu_custom_call.1']
    #allocation4 [shape = 's32[1]{0}', space=sflag, size = 0x4, scoped, tag = 'scoped memory for tpu_custom_call.1']
    #allocation5 [shape = 'u8[147456]{0}', space=vmem, size = 0x24000, scoped, tag = 'input window, operand 1, single buffered']
    #allocation6 [shape = 's32[1]{0}', space=sflag, size = 0x4, scoped, tag = 'scoped memory for tpu_custom_call.1']
    #allocation7 [shape = 'u8[1536]{0}', space=vmem, size = 0x800, scoped, tag = 'input window, operand 2, single buffered']
    #allocation8 [shape = 'u8[98304]{0}', space=vmem, size = 0x18000, scoped, tag = 'output window, operand 0, single buffered']
    %8 = vsyncpa [#allocation3], 0
    %9 = vsyncpa [#allocation6], 0
    %10 = vsyncpa [#allocation4], 0
    // Predicated region
    $region2: #{tpu_custom_call.1} parent=1 // pred_check
      _
    $region3: #{tpu_custom_call.1} parent=1 // pred_check_branch
      %12 = sbr.rel (0) target = $region5
    $region4: #{tpu_custom_call.1} parent=1 // pred_region
      %14 = vsyncadd [#allocation3], 0
      %s15 = sshll.u32 %s0, 4
      %s16 = int_to_ptr.hbm [resolvable:$true] %s15
      %s17 = sshll.u32 [#allocation2], 4
      %s18 = int_to_ptr.vmem [resolvable:$true] %s17
      %23 = dma.hbm_to_vmem [thread:$0]  %s16, 1024, %s18, [#allocation3], 128, 128, 8
    $region5: #{tpu_custom_call.1} parent=1 // pred_fallthru
      _
    // Predicated region
    $region6: #{tpu_custom_call.1} parent=1 // pred_check
      _
    $region7: #{tpu_custom_call.1} parent=1 // pred_check_branch
      %25 = sbr.rel (0) target = $region9
    $region8: #{tpu_custom_call.1} parent=1 // pred_region
      %27 = vsyncadd [#allocation6], 0
      %s28 = sshll.u32 %s1, 4
      %s29 = int_to_ptr.hbm [resolvable:$true] %s28
      %s30 = sshll.u32 [#allocation5], 4
      %s31 = int_to_ptr.vmem [resolvable:$true] %s30
      %36 = dma.hbm_to_vmem [thread:$0]  %s29, 4608, %s31, [#allocation6], 192, 192, 12
    $region9: #{tpu_custom_call.1} parent=1 // pred_fallthru
      _
    // Predicated region
    $region10: #{tpu_custom_call.1} parent=1 // pred_check
      _
    $region11: #{tpu_custom_call.1} parent=1 // pred_check_branch
      %38 = sbr.rel (0) target = $region13
    $region12: #{tpu_custom_call.1} parent=1 // pred_region
      %40 = vsyncadd [#allocation6], 0
      %s42 = sshll.u32 %s2, 4
      %s43 = int_to_ptr.hbm [resolvable:$true] %s42
      %s44 = sshll.u32 [#allocation7], 4
      %s45 = int_to_ptr.vmem [resolvable:$true] %s44
      %47 = dma.hbm_to_vmem [thread:$0]  %s43, 48, %s45, [#allocation6]
    $region13: #{tpu_custom_call.1} parent=1 // pred_fallthru
      _
    // Predicated region
    $region14: #{tpu_custom_call.1} parent=1 // pred_check
      _
    $region15: #{tpu_custom_call.1} parent=1 // pred_check_branch
      %49 = sbr.rel (0) target = $region17
    $region16: #{tpu_custom_call.1} parent=1 // pred_region
      %51 = dma.done [#allocation3], 1024
    $region17: #{tpu_custom_call.1} parent=1 // pred_fallthru
      _
    // Predicated region
    $region18: #{tpu_custom_call.1} parent=1 // pred_check
      _
    $region19: #{tpu_custom_call.1} parent=1 // pred_check_branch
      %53 = sbr.rel (0) target = $region21
    $region20: #{tpu_custom_call.1} parent=1 // pred_region
      %55 = dma.done [#allocation6], 4608
    $region21: #{tpu_custom_call.1} parent=1 // pred_fallthru
      _
    // Predicated region
    $region22: #{tpu_custom_call.1} parent=1 // pred_check
      _
    $region23: #{tpu_custom_call.1} parent=1 // pred_check_branch
      %57 = sbr.rel (0) target = $region25
    $region24: #{tpu_custom_call.1} parent=1 // pred_region
      %59 = dma.done [#allocation6], 48
    $region25: #{tpu_custom_call.1} parent=1 // pred_fallthru
      _
    %v61 = vld [vmem:[#allocation2] sm:$0xff]
    %v62 = vld [vmem:[#allocation2 + $0x8] sm:$0xff]
    %v63 = vld [vmem:[#allocation2 + $0x10] sm:$0xff]
    %v64 = vld [vmem:[#allocation2 + $0x18] sm:$0xff]
    %v65 = vld [vmem:[#allocation2 + $0x20] sm:$0xff]
    %v66 = vld [vmem:[#allocation2 + $0x28] sm:$0xff]
    %v67 = vld [vmem:[#allocation2 + $0x30] sm:$0xff]
    %v68 = vld [vmem:[#allocation2 + $0x38] sm:$0xff]
    %v69 = vld [vmem:[#allocation5] sm:$0xff]
    %v70 = vld [vmem:[#allocation5 + $0x8] sm:$0xf]
    %v71 = vld [vmem:[#allocation5 + $0xc] sm:$0xff]
    %v72 = vld [vmem:[#allocation5 + $0x14] sm:$0xf]
    %v73 = vld [vmem:[#allocation5 + $0x18] sm:$0xff]
    %v74 = vld [vmem:[#allocation5 + $0x20] sm:$0xf]
    %v75 = vld [vmem:[#allocation5 + $0x24] sm:$0xff]
    %v76 = vld [vmem:[#allocation5 + $0x2c] sm:$0xf]
    %v77 = vld [vmem:[#allocation5 + $0x30] sm:$0xff]
    %v78 = vld [vmem:[#allocation5 + $0x38] sm:$0xf]
    %v79 = vld [vmem:[#allocation5 + $0x3c] sm:$0xff]
    %v80 = vld [vmem:[#allocation5 + $0x44] sm:$0xf]
    %v81 = vld [vmem:[#allocation5 + $0x48] sm:$0xff]
    %v82 = vld [vmem:[#allocation5 + $0x50] sm:$0xf]
    %v83 = vld [vmem:[#allocation5 + $0x54] sm:$0xff]
    %v84 = vld [vmem:[#allocation5 + $0x5c] sm:$0xf]
    %v85 = vld [vmem:[#allocation5 + $0x60] sm:$0xff]
    %v86 = vld [vmem:[#allocation5 + $0x68] sm:$0xf]
    %v87 = vld [vmem:[#allocation5 + $0x6c] sm:$0xff]
    %v88 = vld [vmem:[#allocation5 + $0x74] sm:$0xf]
    %v89 = vld [vmem:[#allocation5 + $0x78] sm:$0xff]
    %v90 = vld [vmem:[#allocation5 + $0x80] sm:$0xf]
    %v91 = vld [vmem:[#allocation5 + $0x84] sm:$0xff]
    %v92 = vld [vmem:[#allocation5 + $0x8c] sm:$0xf]
    %v93 = vld [vmem:[#allocation5 + $0x90] sm:$0xff]
    %v94 = vld [vmem:[#allocation5 + $0x98] sm:$0xf]
    %v95 = vld [vmem:[#allocation5 + $0x9c] sm:$0xff]
    %v96 = vld [vmem:[#allocation5 + $0xa4] sm:$0xf]
    %v97 = vld [vmem:[#allocation5 + $0xa8] sm:$0xff]
    %v98 = vld [vmem:[#allocation5 + $0xb0] sm:$0xf]
    %v99 = vld [vmem:[#allocation5 + $0xb4] sm:$0xff]
    %v100 = vld [vmem:[#allocation5 + $0xbc] sm:$0xf]
    %v101 = vld [vmem:[#allocation5 + $0xc0] sm:$0xff]
    %v102 = vld [vmem:[#allocation5 + $0xc8] sm:$0xf]
    %v103 = vld [vmem:[#allocation5 + $0xcc] sm:$0xff]
    %v104 = vld [vmem:[#allocation5 + $0xd4] sm:$0xf]
    %v105 = vld [vmem:[#allocation5 + $0xd8] sm:$0xff]
    %v106 = vld [vmem:[#allocation5 + $0xe0] sm:$0xf]
    %v107 = vld [vmem:[#allocation5 + $0xe4] sm:$0xff]
    %v108 = vld [vmem:[#allocation5 + $0xec] sm:$0xf]
    %v109 = vld [vmem:[#allocation5 + $0xf0] sm:$0xff]
    %v110 = vld [vmem:[#allocation5 + $0xf8] sm:$0xf]
    %v111 = vld [vmem:[#allocation5 + $0xfc] sm:$0xff]
    %v112 = vld [vmem:[#allocation5 + $0x104] sm:$0xf]
    %v113 = vld [vmem:[#allocation5 + $0x108] sm:$0xff]
    %v114 = vld [vmem:[#allocation5 + $0x110] sm:$0xf]
    %v115 = vld [vmem:[#allocation5 + $0x114] sm:$0xff]
    %v116 = vld [vmem:[#allocation5 + $0x11c] sm:$0xf]
    %v117 = vld [vmem:[#allocation7] sm:$0x7]
    %v119 = vperm.slane %v117, 0
    %v120 = vperm.slane %v117, 1
    %v121 = vperm.slane %v117, 2
    %v133 = vunpack.c.l.b16 %v61
    %v134 = vunpack.c.h.b16 %v61
    %v135 = vunpack.c.l.b16 %v62
    %v136 = vunpack.c.h.b16 %v62
    %v137 = vunpack.c.l.b16 %v63
    %v138 = vunpack.c.h.b16 %v63
    %v139 = vunpack.c.l.b16 %v64
    %v140 = vunpack.c.h.b16 %v64
    %v141 = vunpack.c.l.b16 %v65
    %v142 = vunpack.c.h.b16 %v65
    %v143 = vunpack.c.l.b16 %v66
    %v144 = vunpack.c.h.b16 %v66
    %v145 = vunpack.c.l.b16 %v67
    %v146 = vunpack.c.h.b16 %v67
    %v147 = vunpack.c.l.b16 %v68
    %v148 = vunpack.c.h.b16 %v68
    %v149 = vpack.c.b16 %v135, %v133
    %v150 = vpack.c.b16 %v136, %v134
    %v151 = vpack.c.b16 %v139, %v137
    %v152 = vpack.c.b16 %v140, %v138
    %v153 = vpack.c.b16 %v143, %v141
    %v154 = vpack.c.b16 %v144, %v142
    %v155 = vpack.c.b16 %v147, %v145
    %v156 = vpack.c.b16 %v148, %v146
    %v209 = vunpack.c.l.b16 %v69
    %v210 = vunpack.c.h.b16 %v69
    %v211 = vunpack.c.l.b16 %v70
    %v212 = vunpack.c.l.b16 %v71
    %v213 = vunpack.c.h.b16 %v71
    %v214 = vunpack.c.l.b16 %v72
    %v215 = vunpack.c.l.b16 %v73
    %v216 = vunpack.c.h.b16 %v73
    %v217 = vunpack.c.l.b16 %v74
    %v218 = vunpack.c.l.b16 %v75
    %v219 = vunpack.c.h.b16 %v75
    %v220 = vunpack.c.l.b16 %v76
    %v221 = vunpack.c.l.b16 %v77
    %v222 = vunpack.c.h.b16 %v77
    %v223 = vunpack.c.l.b16 %v78
    %v224 = vunpack.c.l.b16 %v79
    %v225 = vunpack.c.h.b16 %v79
    %v226 = vunpack.c.l.b16 %v80
    %v227 = vunpack.c.l.b16 %v81
    %v228 = vunpack.c.h.b16 %v81
    %v229 = vunpack.c.l.b16 %v82
    %v230 = vunpack.c.l.b16 %v83
    %v231 = vunpack.c.h.b16 %v83
    %v232 = vunpack.c.l.b16 %v84
    %v233 = vunpack.c.l.b16 %v85
    %v234 = vunpack.c.h.b16 %v85
    %v235 = vunpack.c.l.b16 %v86
    %v236 = vunpack.c.l.b16 %v87
    %v237 = vunpack.c.h.b16 %v87
    %v238 = vunpack.c.l.b16 %v88
    %v239 = vunpack.c.l.b16 %v89
    %v240 = vunpack.c.h.b16 %v89
    %v241 = vunpack.c.l.b16 %v90
    %v242 = vunpack.c.l.b16 %v91
    %v243 = vunpack.c.h.b16 %v91
    %v244 = vunpack.c.l.b16 %v92
    %v245 = vunpack.c.l.b16 %v93
    %v246 = vunpack.c.h.b16 %v93
    %v247 = vunpack.c.l.b16 %v94
    %v248 = vunpack.c.l.b16 %v95
    %v249 = vunpack.c.h.b16 %v95
    %v250 = vunpack.c.l.b16 %v96
    %v251 = vunpack.c.l.b16 %v97
    %v252 = vunpack.c.h.b16 %v97
    %v253 = vunpack.c.l.b16 %v98
    %v254 = vunpack.c.l.b16 %v99
    %v255 = vunpack.c.h.b16 %v99
    %v256 = vunpack.c.l.b16 %v100
    %v257 = vunpack.c.l.b16 %v101
    %v258 = vunpack.c.h.b16 %v101
    %v259 = vunpack.c.l.b16 %v102
    %v260 = vunpack.c.l.b16 %v103
    %v261 = vunpack.c.h.b16 %v103
    %v262 = vunpack.c.l.b16 %v104
    %v263 = vunpack.c.l.b16 %v105
    %v264 = vunpack.c.h.b16 %v105
    %v265 = vunpack.c.l.b16 %v106
    %v266 = vunpack.c.l.b16 %v107
    %v267 = vunpack.c.h.b16 %v107
    %v268 = vunpack.c.l.b16 %v108
    %v269 = vunpack.c.l.b16 %v109
    %v270 = vunpack.c.h.b16 %v109
    %v271 = vunpack.c.l.b16 %v110
    %v272 = vunpack.c.l.b16 %v111
    %v273 = vunpack.c.h.b16 %v111
    %v274 = vunpack.c.l.b16 %v112
    %v275 = vunpack.c.l.b16 %v113
    %v276 = vunpack.c.h.b16 %v113
    %v277 = vunpack.c.l.b16 %v114
    %v278 = vunpack.c.l.b16 %v115
    %v279 = vunpack.c.h.b16 %v115
    %v280 = vunpack.c.l.b16 %v116
    %v281 = vpack.c.b16 %v212, %v209
    %v282 = vpack.c.b16 %v213, %v210
    %v283 = vpack.c.b16 %v214, %v211
    %v284 = vpack.c.b16 %v218, %v215
    %v285 = vpack.c.b16 %v219, %v216
    %v286 = vpack.c.b16 %v220, %v217
    %v287 = vpack.c.b16 %v224, %v221
    %v288 = vpack.c.b16 %v225, %v222
    %v289 = vpack.c.b16 %v226, %v223
    %v290 = vpack.c.b16 %v230, %v227
    %v291 = vpack.c.b16 %v231, %v228
    %v292 = vpack.c.b16 %v232, %v229
    %v293 = vpack.c.b16 %v236, %v233
    %v294 = vpack.c.b16 %v237, %v234
    %v295 = vpack.c.b16 %v238, %v235
    %v296 = vpack.c.b16 %v242, %v239
    %v297 = vpack.c.b16 %v243, %v240
    %v298 = vpack.c.b16 %v244, %v241
    %v299 = vpack.c.b16 %v248, %v245
    %v300 = vpack.c.b16 %v249, %v246
    %v301 = vpack.c.b16 %v250, %v247
    %v302 = vpack.c.b16 %v254, %v251
    %v303 = vpack.c.b16 %v255, %v252
    %v304 = vpack.c.b16 %v256, %v253
    %v305 = vpack.c.b16 %v260, %v257
    %v306 = vpack.c.b16 %v261, %v258
    %v307 = vpack.c.b16 %v262, %v259
    %v308 = vpack.c.b16 %v266, %v263
    %v309 = vpack.c.b16 %v267, %v264
    %v310 = vpack.c.b16 %v268, %v265
    %v311 = vpack.c.b16 %v272, %v269
    %v312 = vpack.c.b16 %v273, %v270
    %v313 = vpack.c.b16 %v274, %v271
    %v314 = vpack.c.b16 %v278, %v275
    %v315 = vpack.c.b16 %v279, %v276
    %v316 = vpack.c.b16 %v280, %v277
    %vm353 = vcmask 523264
    %v355 = vsel %vm353, %v150, 0
    %v358 = vsel %vm353, %v152, 0
    %v361 = vsel %vm353, %v154, 0
    %v364 = vsel %vm353, %v156, 0
    %366 = vmatpush.bf16.msra.mxu0 %v302
    %367 = vmatpush.bf16.msra.mxu0 %v299
    %368 = vmatpush.bf16.msra.mxu0 %v296
    %369 = vmatpush.bf16.msra.mxu0 %v293
    %370 = vmatpush.bf16.msra.mxu0 %v290
    %371 = vmatpush.bf16.msra.mxu0 %v287
    %372 = vmatpush.bf16.msra.mxu0 %v284
    %373 = vmatpush.bf16.msra.mxu0 %v281
    %374 = vmatmul.bf16.gmra.mxu0 %v149
    %v375 = vpop.f32.mrf.mxu0
    %v376 = vadd.f32 %v119, %v375
    %v377 = vpop.f32.mrf.mxu0
    %v378 = vadd.f32 %v119, %v377
    %379 = vmatmul.bf16.gmra.mxu0 %v151
    %v380 = vpop.f32.mrf.mxu0
    %v381 = vadd.f32 %v119, %v380
    %v382 = vpop.f32.mrf.mxu0
    %v383 = vadd.f32 %v119, %v382
    %384 = vmatmul.bf16.gmra.mxu0 %v153
    %v385 = vpop.f32.mrf.mxu0
    %v386 = vadd.f32 %v119, %v385
    %v387 = vpop.f32.mrf.mxu0
    %v388 = vadd.f32 %v119, %v387
    %389 = vmatmul.bf16.gmra.mxu0 %v155
    %v390 = vpop.f32.mrf.mxu0
    %v391 = vadd.f32 %v119, %v390
    %v392 = vpop.f32.mrf.mxu0
    %v393 = vadd.f32 %v119, %v392
    %394 = vdwg.mxu0
    %395 = vmatpush.bf16.msra.mxu0 0
    %396 = vmatpush.bf16.msra.mxu0 0
    %397 = vmatpush.bf16.msra.mxu0 0
    %398 = vmatpush.bf16.msra.mxu0 0
    %399 = vmatpush.bf16.msra.mxu0 %v314
    %400 = vmatpush.bf16.msra.mxu0 %v311
    %401 = vmatpush.bf16.msra.mxu0 %v308
    %402 = vmatpush.bf16.msra.mxu0 %v305
    %403 = vmatmul.bf16.gmra.mxu0 %v355
    %v404 = vpop.f32.mrf.mxu0
    %v405 = vadd.f32 %v376, %v404
    %v406 = vpop.f32.mrf.mxu0
    %v407 = vadd.f32 %v378, %v406
    %408 = vmatmul.bf16.gmra.mxu0 %v358
    %v409 = vpop.f32.mrf.mxu0
    %v410 = vadd.f32 %v381, %v409
    %v411 = vpop.f32.mrf.mxu0
    %v412 = vadd.f32 %v383, %v411
    %413 = vmatmul.bf16.gmra.mxu0 %v361
    %v414 = vpop.f32.mrf.mxu0
    %v415 = vadd.f32 %v386, %v414
    %v416 = vpop.f32.mrf.mxu0
    %v417 = vadd.f32 %v388, %v416
    %418 = vmatmul.bf16.gmra.mxu0 %v364
    %v419 = vpop.f32.mrf.mxu0
    %v420 = vadd.f32 %v391, %v419
    %v421 = vpop.f32.mrf.mxu0
    %v422 = vadd.f32 %v393, %v421
    %423 = vdwg.mxu0
    %424 = vmatpush.bf16.msra.mxu0 %v303
    %425 = vmatpush.bf16.msra.mxu0 %v300
    %426 = vmatpush.bf16.msra.mxu0 %v297
    %427 = vmatpush.bf16.msra.mxu0 %v294
    %428 = vmatpush.bf16.msra.mxu0 %v291
    %429 = vmatpush.bf16.msra.mxu0 %v288
    %430 = vmatpush.bf16.msra.mxu0 %v285
    %431 = vmatpush.bf16.msra.mxu0 %v282
    %432 = vmatmul.bf16.gmra.mxu0 %v149
    %v433 = vpop.f32.mrf.mxu0
    %v434 = vadd.f32 %v120, %v433
    %v435 = vpop.f32.mrf.mxu0
    %v436 = vadd.f32 %v120, %v435
    %437 = vmatmul.bf16.gmra.mxu0 %v151
    %v438 = vpop.f32.mrf.mxu0
    %v439 = vadd.f32 %v120, %v438
    %v440 = vpop.f32.mrf.mxu0
    %v441 = vadd.f32 %v120, %v440
    %442 = vmatmul.bf16.gmra.mxu0 %v153
    %v443 = vpop.f32.mrf.mxu0
    %v444 = vadd.f32 %v120, %v443
    %v445 = vpop.f32.mrf.mxu0
    %v446 = vadd.f32 %v120, %v445
    %447 = vmatmul.bf16.gmra.mxu0 %v155
    %v448 = vpop.f32.mrf.mxu0
    %v449 = vadd.f32 %v120, %v448
    %v450 = vpop.f32.mrf.mxu0
    %v451 = vadd.f32 %v120, %v450
    %452 = vdwg.mxu0
    %453 = vmatpush.bf16.msra.mxu0 0
    %454 = vmatpush.bf16.msra.mxu0 0
    %455 = vmatpush.bf16.msra.mxu0 0
    %456 = vmatpush.bf16.msra.mxu0 0
    %457 = vmatpush.bf16.msra.mxu0 %v315
    %458 = vmatpush.bf16.msra.mxu0 %v312
    %459 = vmatpush.bf16.msra.mxu0 %v309
    %460 = vmatpush.bf16.msra.mxu0 %v306
    %461 = vmatmul.bf16.gmra.mxu0 %v355
    %v462 = vpop.f32.mrf.mxu0
    %v463 = vadd.f32 %v434, %v462
    %v464 = vpop.f32.mrf.mxu0
    %v465 = vadd.f32 %v436, %v464
    %466 = vmatmul.bf16.gmra.mxu0 %v358
    %v467 = vpop.f32.mrf.mxu0
    %v468 = vadd.f32 %v439, %v467
    %v469 = vpop.f32.mrf.mxu0
    %v470 = vadd.f32 %v441, %v469
    %471 = vmatmul.bf16.gmra.mxu0 %v361
    %v472 = vpop.f32.mrf.mxu0
    %v473 = vadd.f32 %v444, %v472
    %v474 = vpop.f32.mrf.mxu0
    %v475 = vadd.f32 %v446, %v474
    %476 = vmatmul.bf16.gmra.mxu0 %v364
    %v477 = vpop.f32.mrf.mxu0
    %v478 = vadd.f32 %v449, %v477
    %v479 = vpop.f32.mrf.mxu0
    %v480 = vadd.f32 %v451, %v479
    %481 = vdwg.mxu0
    %482 = vmatpush.bf16.msra.mxu0 %v304
    %483 = vmatpush.bf16.msra.mxu0 %v301
    %484 = vmatpush.bf16.msra.mxu0 %v298
    %485 = vmatpush.bf16.msra.mxu0 %v295
    %486 = vmatpush.bf16.msra.mxu0 %v292
    %487 = vmatpush.bf16.msra.mxu0 %v289
    %488 = vmatpush.bf16.msra.mxu0 %v286
    %489 = vmatpush.bf16.msra.mxu0 %v283
    %490 = vmatmul.bf16.gmra.mxu0 %v149
    %v491 = vpop.f32.mrf.mxu0
    %v492 = vadd.f32 %v121, %v491
    %v493 = vpop.f32.mrf.mxu0
    %v494 = vadd.f32 %v121, %v493
    %495 = vmatmul.bf16.gmra.mxu0 %v151
    %v496 = vpop.f32.mrf.mxu0
    %v497 = vadd.f32 %v121, %v496
    %v498 = vpop.f32.mrf.mxu0
    %v499 = vadd.f32 %v121, %v498
    %500 = vmatmul.bf16.gmra.mxu0 %v153
    %v501 = vpop.f32.mrf.mxu0
    %v502 = vadd.f32 %v121, %v501
    %v503 = vpop.f32.mrf.mxu0
    %v504 = vadd.f32 %v121, %v503
    %505 = vmatmul.bf16.gmra.mxu0 %v155
    %v506 = vpop.f32.mrf.mxu0
    %v507 = vadd.f32 %v121, %v506
    %v508 = vpop.f32.mrf.mxu0
    %v509 = vadd.f32 %v121, %v508
    %510 = vdwg.mxu0
    %511 = vmatpush.bf16.msra.mxu0 0
    %512 = vmatpush.bf16.msra.mxu0 0
    %513 = vmatpush.bf16.msra.mxu0 0
    %514 = vmatpush.bf16.msra.mxu0 0
    %515 = vmatpush.bf16.msra.mxu0 %v316
    %516 = vmatpush.bf16.msra.mxu0 %v313
    %517 = vmatpush.bf16.msra.mxu0 %v310
    %518 = vmatpush.bf16.msra.mxu0 %v307
    %519 = vmatmul.bf16.gmra.mxu0 %v355
    %v520 = vpop.f32.mrf.mxu0
    %v521 = vadd.f32 %v492, %v520
    %v522 = vpop.f32.mrf.mxu0
    %v523 = vadd.f32 %v494, %v522
    %524 = vmatmul.bf16.gmra.mxu0 %v358
    %v525 = vpop.f32.mrf.mxu0
    %v526 = vadd.f32 %v497, %v525
    %v527 = vpop.f32.mrf.mxu0
    %v528 = vadd.f32 %v499, %v527
    %529 = vmatmul.bf16.gmra.mxu0 %v361
    %v530 = vpop.f32.mrf.mxu0
    %v531 = vadd.f32 %v502, %v530
    %v532 = vpop.f32.mrf.mxu0
    %v533 = vadd.f32 %v504, %v532
    %534 = vmatmul.bf16.gmra.mxu0 %v364
    %v535 = vpop.f32.mrf.mxu0
    %v536 = vadd.f32 %v507, %v535
    %v537 = vpop.f32.mrf.mxu0
    %v538 = vadd.f32 %v509, %v537
    %539 = vdwg.mxu0
    %v540 = vmax.f32 %v405, 0.0
    %v541 = vmax.f32 %v463, 0.0
    %v542 = vmax.f32 %v521, 0.0
    %v543 = vmax.f32 %v407, 0.0
    %v544 = vmax.f32 %v465, 0.0
    %v545 = vmax.f32 %v523, 0.0
    %v546 = vmax.f32 %v410, 0.0
    %v547 = vmax.f32 %v468, 0.0
    %v548 = vmax.f32 %v526, 0.0
    %v549 = vmax.f32 %v412, 0.0
    %v550 = vmax.f32 %v470, 0.0
    %v551 = vmax.f32 %v528, 0.0
    %v552 = vmax.f32 %v415, 0.0
    %v553 = vmax.f32 %v473, 0.0
    %v554 = vmax.f32 %v531, 0.0
    %v555 = vmax.f32 %v417, 0.0
    %v556 = vmax.f32 %v475, 0.0
    %v557 = vmax.f32 %v533, 0.0
    %v558 = vmax.f32 %v420, 0.0
    %v559 = vmax.f32 %v478, 0.0
    %v560 = vmax.f32 %v536, 0.0
    %v561 = vmax.f32 %v422, 0.0
    %v562 = vmax.f32 %v480, 0.0
    %v563 = vmax.f32 %v538, 0.0
    %564 = vst [vmem:[#allocation8] sm:$0xff] %v540
    %565 = vst [vmem:[#allocation8 + $0x8] sm:$0xff] %v541
    %566 = vst.msk [vmem:[#allocation8 + $0x10] sm:$0xff] %vm353, %v542
    %567 = vst [vmem:[#allocation8 + $0x18] sm:$0xff] %v543
    %568 = vst [vmem:[#allocation8 + $0x20] sm:$0xff] %v544
    %569 = vst.msk [vmem:[#allocation8 + $0x28] sm:$0xff] %vm353, %v545
    %570 = vst [vmem:[#allocation8 + $0x30] sm:$0xff] %v546
    %571 = vst [vmem:[#allocation8 + $0x38] sm:$0xff] %v547
    %572 = vst.msk [vmem:[#allocation8 + $0x40] sm:$0xff] %vm353, %v548
    %573 = vst [vmem:[#allocation8 + $0x48] sm:$0xff] %v549
    %574 = vst [vmem:[#allocation8 + $0x50] sm:$0xff] %v550
    %575 = vst.msk [vmem:[#allocation8 + $0x58] sm:$0xff] %vm353, %v551
    %576 = vst [vmem:[#allocation8 + $0x60] sm:$0xff] %v552
    %577 = vst [vmem:[#allocation8 + $0x68] sm:$0xff] %v553
    %578 = vst.msk [vmem:[#allocation8 + $0x70] sm:$0xff] %vm353, %v554
    %579 = vst [vmem:[#allocation8 + $0x78] sm:$0xff] %v555
    %580 = vst [vmem:[#allocation8 + $0x80] sm:$0xff] %v556
    %581 = vst.msk [vmem:[#allocation8 + $0x88] sm:$0xff] %vm353, %v557
    %582 = vst [vmem:[#allocation8 + $0x90] sm:$0xff] %v558
    %583 = vst [vmem:[#allocation8 + $0x98] sm:$0xff] %v559
    %584 = vst.msk [vmem:[#allocation8 + $0xa0] sm:$0xff] %vm353, %v560
    %585 = vst [vmem:[#allocation8 + $0xa8] sm:$0xff] %v561
    %586 = vst [vmem:[#allocation8 + $0xb0] sm:$0xff] %v562
    %587 = vst.msk [vmem:[#allocation8 + $0xb8] sm:$0xff] %vm353, %v563
    // Predicated region
    $region26: #{tpu_custom_call.1} parent=1 // pred_check
      _
    $region27: #{tpu_custom_call.1} parent=1 // pred_check_branch
      %589 = sbr.rel (0) target = $region29
    $region28: #{tpu_custom_call.1} parent=1 // pred_region
      %591 = vsyncadd [#allocation4], 0
      %s592 = sshll.u32 [#allocation8], 4
      %s593 = int_to_ptr.vmem [resolvable:$true] %s592
      %s594 = sshll.u32 %s3, 4
      %s595 = int_to_ptr.hbm [resolvable:$true] %s594
      %600 = dma.vmem_to_hbm [thread:$0]  %s593, 3072, %s595, [#allocation4], 384, 384, 24
    $region29: #{tpu_custom_call.1} parent=1 // pred_fallthru
      _
    // Predicated region
    $region30: #{tpu_custom_call.1} parent=1 // pred_check
      _
    $region31: #{tpu_custom_call.1} parent=1 // pred_check_branch
      %602 = sbr.rel (0) target = $region33
    $region32: #{tpu_custom_call.1} parent=1 // pred_region
      %604 = dma.done [#allocation4], 3072
    $region33: #{tpu_custom_call.1} parent=1 // pred_fallthru
      _
    %605 = vsyncpa [#allocation3], 1
    %606 = vsyncpa [#allocation6], 1
    %607 = vsyncpa [#allocation4], 1

</llo_original>
